<compile_context>
chip_gen: v7x
topology: tpu7x:2x2x1
jax: 0.10.0
libtpu: 0.0.40
codegen_flags: <defaults>
</compile_context>

<pallas_src>
import functools

import jax
import jax.numpy as jnp
from jax.experimental import pallas as pl
from jax.experimental.pallas import tpu as pltpu

HIDDEN = 50
_TRANS_B = (((1,), (1,)), ((), ()))  # contract dim 1 of lhs with dim 1 of rhs


def _round_up(x: int, m: int) -> int:
    return ((x + m - 1) // m) * m


def cnet_kernel(s_ref, a_ref, ws_ref, wa_ref, b_ref, wo_ref, bo_ref, out_ref,
                *, mxu_dtype):
    # Input projections on the MXU, batch in lanes: h[n, b] = sum_k W[n,k]*x[b,k]
    h = jax.lax.dot_general(ws_ref[...].astype(mxu_dtype),
                            s_ref[...].astype(mxu_dtype),
                            _TRANS_B, preferred_element_type=jnp.float32)
    h = h + jax.lax.dot_general(wa_ref[...].astype(mxu_dtype),
                                a_ref[...].astype(mxu_dtype),
                                _TRANS_B, preferred_element_type=jnp.float32)
    # Bias + ReLU in f32 on fully lane-dense (HIDDEN, tile_b) vregs.
    net = jnp.maximum(h + b_ref[...], 0.0)
    # 50 -> 1 projection: dense VPU multiply + sublane reduce; +bo from SMEM.
    # Result is a lane-dense (1, tile_b) row -> dense vector stores.
    q = jnp.sum(net * wo_ref[...], axis=0, keepdims=True) + bo_ref[0, 0]
    out_ref[...] = q.reshape(out_ref.shape).astype(out_ref.dtype)


@functools.partial(jax.jit, static_argnames=("tile_b", "use_bf16"))
def cnet_forward(s, a, params, *, tile_b: int = 16384, use_bf16: bool = True):
    """s: (B, s_dim) f32, a: (B, a_dim) f32 -> q: (B, 1) f32.

    params = (ws, bs, wa, ba, wo, bo) in native PyTorch Linear layouts:
      ws (50, s_dim), bs (50,), wa (50, a_dim), ba (50,), wo (1, 50), bo (1,).
    """
    ws, bs, wa, ba, wo, bo = params
    B, s_dim = s.shape
    a_dim = a.shape[1]
    assert ws.shape == (HIDDEN, s_dim) and wa.shape == (HIDDEN, a_dim)
    assert wo.shape == (1, HIDDEN)

    # Tile selection: multiple of 128 lanes (lane-dense output rows); cap so
    # there are >= 2 grid steps when B allows (v7x megacore), floor of 128.
    cap = _round_up(max(pl.cdiv(B, 2), 1), 128)
    tile_b = max(128, min(_round_up(tile_b, 128), cap))
    n_tiles = pl.cdiv(B, tile_b)

    # Tiny parameter reshapes (no HBM slab passes): combined hidden bias and
    # output weight as (HIDDEN, 1) columns for lane-broadcast; bo as SMEM scalar.
    b_col = (bs + ba).reshape(HIDDEN, 1).astype(jnp.float32)
    wo_col = wo.reshape(HIDDEN, 1).astype(jnp.float32)
    bo_s = bo.reshape(1, 1).astype(jnp.float32)

    kernel = functools.partial(
        cnet_kernel, mxu_dtype=jnp.bfloat16 if use_bf16 else jnp.float32)

    out = pl.pallas_call(
        kernel,
        out_shape=jax.ShapeDtypeStruct((n_tiles, 1, tile_b), jnp.float32),
        grid=(n_tiles,),
        in_specs=[
            # Activations: blocked on batch, double-buffered by the pipeline.
            pl.BlockSpec((tile_b, s_dim), lambda i: (i, 0)),
            pl.BlockSpec((tile_b, a_dim), lambda i: (i, 0)),
            # Weights / biases: resident in VMEM across all grid steps.
            pl.BlockSpec((HIDDEN, s_dim), lambda i: (0, 0)),
            pl.BlockSpec((HIDDEN, a_dim), lambda i: (0, 0)),
            pl.BlockSpec((HIDDEN, 1), lambda i: (0, 0)),
            pl.BlockSpec((HIDDEN, 1), lambda i: (0, 0)),
            # Scalar output bias in SMEM.
            pl.BlockSpec(memory_space=pltpu.MemorySpace.SMEM),
        ],
        # Lane-dense output slab: one (1, 1, tile_b) row per grid step.
        out_specs=pl.BlockSpec((1, 1, tile_b), lambda i: (i, 0, 0)),
        compiler_params=pltpu.CompilerParams(
            dimension_semantics=("parallel",),
            vmem_limit_bytes=32 * 1024 * 1024,
        ),
    )(s, a, ws, wa, b_col, wo_col, bo_s)

    # Flatten the (n_tiles, 1, tile_b) slab back to batch order and drop the
    # garbage rows of a partial last tile.
    return out.reshape(n_tiles * tile_b)[:B].reshape(B, 1)


def init_cnet_params(key, s_dim, a_dim):
    """Deterministic init matching the PyTorch module, native Linear layouts.

    Weights ~ N(0, 0.1) (as in the module); biases ~ U(-1/sqrt(fan_in),
    1/sqrt(fan_in)) (PyTorch Linear default).
    """
    k = jax.random.split(key, 6)
    ws = 0.1 * jax.random.normal(k[0], (HIDDEN, s_dim), jnp.float32)
    wa = 0.1 * jax.random.normal(k[1], (HIDDEN, a_dim), jnp.float32)
    wo = 0.1 * jax.random.normal(k[2], (1, HIDDEN), jnp.float32)
    bs = jax.random.uniform(k[3], (HIDDEN,), jnp.float32,
                            -(s_dim ** -0.5), s_dim ** -0.5)
    ba = jax.random.uniform(k[4], (HIDDEN,), jnp.float32,
                            -(a_dim ** -0.5), a_dim ** -0.5)
    bo = jax.random.uniform(k[5], (1,), jnp.float32,
                            -(HIDDEN ** -0.5), HIDDEN ** -0.5)
    return ws, bs, wa, ba, wo, bo


def cnet_reference(s, a, params, use_bf16):
    """Pure-JAX reference of the same math (bf16 or full-f32 semantics)."""
    ws, bs, wa, ba, wo, bo = params
    if use_bf16:
        dt = jnp.bfloat16
        h = (jnp.dot(s.astype(dt), ws.T.astype(dt),
                     preferred_element_type=jnp.float32)
             + jnp.dot(a.astype(dt), wa.T.astype(dt),
                       preferred_element_type=jnp.float32))
    else:
        hp = jax.lax.Precision.HIGHEST
        h = jnp.dot(s, ws.T, precision=hp) + jnp.dot(a, wa.T, precision=hp)
    net = jnp.maximum(h + (bs + ba), 0.0)
    return jnp.sum(net * wo[0], axis=-1, keepdims=True) + bo


if __name__ == "__main__":
    key = jax.random.PRNGKey(0)
    B, S_DIM, A_DIM = 2, 16, 4

    k_s, k_a, k_p = jax.random.split(key, 3)
    s = jax.random.normal(k_s, (B, S_DIM), jnp.float32)
    a = jax.random.normal(k_a, (B, A_DIM), jnp.float32)
    params = init_cnet_params(k_p, S_DIM, A_DIM)

    q_bf = cnet_forward(s, a, params, use_bf16=True)
    q_f32 = cnet_forward(s, a, params, use_bf16=False)
    jax.block_until_ready((q_bf, q_f32))

    ref_bf = cnet_reference(s, a, params, use_bf16=True)
    ref_f32 = cnet_reference(s, a, params, use_bf16=False)  # PyTorch f32 semantics

    assert q_bf.shape == (B, 1) and q_f32.shape == (B, 1)
    assert jnp.allclose(q_bf, ref_bf, atol=1e-3, rtol=1e-3)
    assert jnp.allclose(q_bf, ref_f32, atol=3e-2, rtol=3e-2)
    assert jnp.allclose(q_f32, ref_f32, atol=2e-3, rtol=2e-3)

    print("KERNEL_OK")
</pallas_src>

<mosaic_0001>
module attributes {stable_mosaic.version = 11 : i64} {
  func.func @cnet_kernel(%arg0: i32, %arg1: memref<128x16xf32, #tpu.memory_space<vmem>>, %arg2: memref<128x4xf32, #tpu.memory_space<vmem>>, %arg3: memref<50x16xf32, #tpu.memory_space<vmem>>, %arg4: memref<50x4xf32, #tpu.memory_space<vmem>>, %arg5: memref<50x1xf32, #tpu.memory_space<vmem>>, %arg6: memref<50x1xf32, #tpu.memory_space<vmem>>, %arg7: memref<1x1xf32, #tpu.memory_space<smem>>, %arg8: memref<1x1x128xf32, #tpu.memory_space<vmem>>) attributes {dimension_semantics = [#tpu.dimension_semantics<parallel>], iteration_bounds = array<i64: 1>, scalar_prefetch = 0 : i64, scratch_operands = 0 : i64, tpu.core_type = #tpu.core_type<tc>, window_params = [{transform_indices = @transform_0, window_bounds = array<i64: 128, 16>}, {transform_indices = @transform_1, window_bounds = array<i64: 128, 4>}, {pipeline_mode = #tpu.pipeline_mode<synchronous>, transform_indices = @transform_2, window_bounds = array<i64: 50, 16>}, {pipeline_mode = #tpu.pipeline_mode<synchronous>, transform_indices = @transform_3, window_bounds = array<i64: 50, 4>}, {pipeline_mode = #tpu.pipeline_mode<synchronous>, transform_indices = @transform_4, window_bounds = array<i64: 50, 1>}, {pipeline_mode = #tpu.pipeline_mode<synchronous>, transform_indices = @transform_5, window_bounds = array<i64: 50, 1>}, {transform_indices = @transform_6, window_bounds = array<i64: 1, 1>}, {transform_indices = @transform_7, window_bounds = array<i64: 1, 1, 128>}]} {
    %c0 = arith.constant 0 : index
    %c0_0 = arith.constant 0 : index
    %0 = vector.load %arg3[%c0, %c0_0] : memref<50x16xf32, #tpu.memory_space<vmem>>, vector<50x16xf32>
    %1 = arith.truncf %0 : vector<50x16xf32> to vector<50x16xbf16>
    %c0_1 = arith.constant 0 : index
    %c0_2 = arith.constant 0 : index
    %2 = vector.load %arg1[%c0_1, %c0_2] : memref<128x16xf32, #tpu.memory_space<vmem>>, vector<128x16xf32>
    %3 = arith.truncf %2 : vector<128x16xf32> to vector<128x16xbf16>
    %cst = arith.constant dense<0.000000e+00> : vector<50x128xf32>
    %4 = tpu.matmul %1, %3, %cst {dimension_numbers = #tpu.dot_dimension_numbers<[1], [1], [0], [0], [0, 0, 1, 0], [], []>} : vector<50x16xbf16>, vector<128x16xbf16>, vector<50x128xf32> -> vector<50x128xf32>
    %c0_3 = arith.constant 0 : index
    %c0_4 = arith.constant 0 : index
    %5 = vector.load %arg4[%c0_3, %c0_4] : memref<50x4xf32, #tpu.memory_space<vmem>>, vector<50x4xf32>
    %6 = arith.truncf %5 : vector<50x4xf32> to vector<50x4xbf16>
    %c0_5 = arith.constant 0 : index
    %c0_6 = arith.constant 0 : index
    %7 = vector.load %arg2[%c0_5, %c0_6] : memref<128x4xf32, #tpu.memory_space<vmem>>, vector<128x4xf32>
    %8 = arith.truncf %7 : vector<128x4xf32> to vector<128x4xbf16>
    %cst_7 = arith.constant dense<0.000000e+00> : vector<50x128xf32>
    %9 = tpu.matmul %6, %8, %cst_7 {dimension_numbers = #tpu.dot_dimension_numbers<[1], [1], [0], [0], [0, 0, 1, 0], [], []>} : vector<50x4xbf16>, vector<128x4xbf16>, vector<50x128xf32> -> vector<50x128xf32>
    %10 = arith.addf %4, %9 : vector<50x128xf32>
    %c0_8 = arith.constant 0 : index
    %c0_9 = arith.constant 0 : index
    %11 = vector.load %arg5[%c0_8, %c0_9] : memref<50x1xf32, #tpu.memory_space<vmem>>, vector<50x1xf32>
    %12 = vector.broadcast %11 : vector<50x1xf32> to vector<50x128xf32>
    %13 = arith.addf %10, %12 : vector<50x128xf32>
    %cst_10 = arith.constant 0.000000e+00 : f32
    %14 = vector.broadcast %cst_10 : f32 to vector<50x128xf32>
    %15 = arith.maximumf %13, %14 : vector<50x128xf32>
    %c0_11 = arith.constant 0 : index
    %c0_12 = arith.constant 0 : index
    %16 = vector.load %arg6[%c0_11, %c0_12] : memref<50x1xf32, #tpu.memory_space<vmem>>, vector<50x1xf32>
    %17 = vector.broadcast %16 : vector<50x1xf32> to vector<50x128xf32>
    %18 = arith.mulf %15, %17 : vector<50x128xf32>
    %cst_13 = arith.constant dense<0.000000e+00> : vector<128xf32>
    %19 = vector.multi_reduction <add>, %18, %cst_13 [0] : vector<50x128xf32> to vector<128xf32>
    %20 = vector.shape_cast %19 : vector<128xf32> to vector<1x128xf32>
    %c0_14 = arith.constant 0 : index
    %c0_15 = arith.constant 0 : index
    %21 = memref.load %arg7[%c0_14, %c0_15] : memref<1x1xf32, #tpu.memory_space<smem>>
    %22 = vector.broadcast %21 : f32 to vector<1x128xf32>
    %23 = arith.addf %20, %22 : vector<1x128xf32>
    %24 = vector.shape_cast %23 : vector<1x128xf32> to vector<1x1x128xf32>
    %c0_16 = arith.constant 0 : index
    %c0_17 = arith.constant 0 : index
    %c0_18 = arith.constant 0 : index
    %25 = vector.load %arg8[%c0_16, %c0_17, %c0_18] : memref<1x1x128xf32, #tpu.memory_space<vmem>>, vector<1x1x128xf32>
    tpu.vector_store %arg8[%c0_16, %c0_17, %c0_18], %24 {strides = array<i32>} : memref<1x1x128xf32, #tpu.memory_space<vmem>>, vector<1x1x128xf32>,
    return
  }
  func.func @transform_0(%arg0: i32) -> (i32, i32) {
    %c0_i32 = arith.constant 0 : i32
    %c0_i32_0 = arith.constant 0 : i32
    return %arg0, %c0_i32 : i32, i32
  }
  func.func @transform_1(%arg0: i32) -> (i32, i32) {
    %c0_i32 = arith.constant 0 : i32
    %c0_i32_0 = arith.constant 0 : i32
    return %arg0, %c0_i32 : i32, i32
  }
  func.func @transform_2(%arg0: i32) -> (i32, i32) {
    %c0_i32 = arith.constant 0 : i32
    %c0_i32_0 = arith.constant 0 : i32
    %c0_i32_1 = arith.constant 0 : i32
    return %c0_i32, %c0_i32_0 : i32, i32
  }
  func.func @transform_3(%arg0: i32) -> (i32, i32) {
    %c0_i32 = arith.constant 0 : i32
    %c0_i32_0 = arith.constant 0 : i32
    %c0_i32_1 = arith.constant 0 : i32
    return %c0_i32, %c0_i32_0 : i32, i32
  }
  func.func @transform_4(%arg0: i32) -> (i32, i32) {
    %c0_i32 = arith.constant 0 : i32
    %c0_i32_0 = arith.constant 0 : i32
    %c0_i32_1 = arith.constant 0 : i32
    return %c0_i32, %c0_i32_0 : i32, i32
  }
  func.func @transform_5(%arg0: i32) -> (i32, i32) {
    %c0_i32 = arith.constant 0 : i32
    %c0_i32_0 = arith.constant 0 : i32
    %c0_i32_1 = arith.constant 0 : i32
    return %c0_i32, %c0_i32_0 : i32, i32
  }
  func.func @transform_6(%arg0: i32) -> (i32, i32) {
    %c0_i32 = arith.constant 0 : i32
    %c0_i32_0 = arith.constant 0 : i32
    %c0_i32_1 = arith.constant 0 : i32
    return %c0_i32, %c0_i32_0 : i32, i32
  }
  func.func @transform_7(%arg0: i32) -> (i32, i32, i32) {
    %c0_i32 = arith.constant 0 : i32
    %c0_i32_0 = arith.constant 0 : i32
    %c0_i32_1 = arith.constant 0 : i32
    return %arg0, %c0_i32, %c0_i32_0 : i32, i32, i32
  }
}

</mosaic_0001>

<llo_original>
// kernel: cnet_forward.1
$region0: #{cnet_forward.1}
  #allocation0 [shape = 'u32[]', space=smem, size = 0x4, offset = 0x4, fixed_abs, tag = 'smem constant byte address 0x4 - core index']
  #allocation1 [shape = 'u32[144,128]{1,0:T(1,128)}', space=vmem, size = 0x12000, scoped, tag = 'internal scratch']
  #allocation2 [shape = 'f32[1,1]{1,0:T(1,128)S(6)}', space=smem, size = 0x200, scoped, tag = 'scoped memory for cnet_forward.1']
  %s0 = inlined_call_operand.vmem [shape: f32[2,16], index: 0, kind: input, shape index: {}]
  %s1 = inlined_call_operand.vmem [shape: f32[2,4], index: 1, kind: input, shape index: {}]
  %s2 = inlined_call_operand.vmem [shape: f32[50,16], index: 2, kind: input, shape index: {}]
  %s3 = inlined_call_operand.vmem [shape: f32[50,4], index: 3, kind: input, shape index: {}]
  %s4 = inlined_call_operand.vmem [shape: f32[50,1], index: 4, kind: input, shape index: {}]
  %s5 = inlined_call_operand.vmem [shape: f32[50,1], index: 5, kind: input, shape index: {}]
  %s6 = inlined_call_operand.<no memory space> [shape: f32[1,1], index: 6, kind: input, shape index: {}]
  %s7 = inlined_call_operand.vmem [shape: f32[1,1,128], index: 7, kind: output, shape index: {}]
  %s8 = sld [smem:[#allocation0]]
  $region38: #{cnet_forward.1} parent=0
    _
  %s10 = ssub.s32 1, %s8
  %s11 = scalar_select 0, %s10, %s8
  %12 = sst [smem:[#allocation2]] %s6
  // Predicated region
  $region2: #{cnet_forward.1} parent=0 // pred_check
    _
  $region3: #{cnet_forward.1} parent=0 // pred_check_branch
    %14 = sbr.rel (0) target = $region5
  $region4: #{cnet_forward.1} parent=0 // pred_region
    _
  $region5: #{cnet_forward.1} parent=0 // pred_fallthru
    _
  // Predicated region
  $region6: #{cnet_forward.1} parent=0 // pred_check
    _
  $region7: #{cnet_forward.1} parent=0 // pred_check_branch
    %16 = sbr.rel (0) target = $region9
  $region8: #{cnet_forward.1} parent=0 // pred_region
    _
  $region9: #{cnet_forward.1} parent=0 // pred_fallthru
    _
  // Predicated region
  $region10: #{cnet_forward.1} parent=0 // pred_check
    _
  $region11: #{cnet_forward.1} parent=0 // pred_check_branch
    %18 = sbr.rel (0) target = $region13
  $region12: #{cnet_forward.1} parent=0 // pred_region
    _
  $region13: #{cnet_forward.1} parent=0 // pred_fallthru
    _
  // Predicated region
  $region14: #{cnet_forward.1} parent=0 // pred_check
    _
  $region15: #{cnet_forward.1} parent=0 // pred_check_branch
    %20 = sbr.rel (0) target = $region17
  $region16: #{cnet_forward.1} parent=0 // pred_region
    _
  $region17: #{cnet_forward.1} parent=0 // pred_fallthru
    _
  // Predicated region
  $region18: #{cnet_forward.1} parent=0 // pred_check
    _
  $region19: #{cnet_forward.1} parent=0 // pred_check_branch
    %22 = sbr.rel (0) target = $region21
  $region20: #{cnet_forward.1} parent=0 // pred_region
    _
  $region21: #{cnet_forward.1} parent=0 // pred_fallthru
    _
  // Predicated region
  $region22: #{cnet_forward.1} parent=0 // pred_check
    _
  $region23: #{cnet_forward.1} parent=0 // pred_check_branch
    %24 = sbr.rel (0) target = $region25
  $region24: #{cnet_forward.1} parent=0 // pred_region
    _
  $region25: #{cnet_forward.1} parent=0 // pred_fallthru
    _
  // Predicated region
  $region26: #{cnet_forward.1} parent=0 // pred_check
    _
  $region27: #{cnet_forward.1} parent=0 // pred_check_branch
    %26 = sbr.rel (0) target = $region29
  $region28: #{cnet_forward.1} parent=0 // pred_region
    _
  $region29: #{cnet_forward.1} parent=0 // pred_fallthru
    _
  %v28 = vld [vmem:[%s2] sm:$0xff]
  %v29 = vld [vmem:[%s2 + $0x8] sm:$0xff]
  %v30 = vld [vmem:[%s2 + $0x10] sm:$0xff]
  %v31 = vld [vmem:[%s2 + $0x18] sm:$0xff]
  %v32 = vld [vmem:[%s2 + $0x20] sm:$0xff]
  %v33 = vld [vmem:[%s2 + $0x28] sm:$0xff]
  %v34 = vld [vmem:[%s2 + $0x30] sm:$0x3]
  %v35 = vpack.c.bf16 %v29, %v28
  %v36 = vpack.c.bf16 %v31, %v30
  %v37 = vpack.c.bf16 %v33, %v32
  %v38 = vpack.c.bf16 %v34, %v34
  %v39 = vld [vmem:[%s0] sm:$0xff]
  %v40 = vld [vmem:[%s0 + $0x8] sm:$0xff]
  %v41 = vld [vmem:[%s0 + $0x10] sm:$0xff]
  %v42 = vld [vmem:[%s0 + $0x18] sm:$0xff]
  %v43 = vld [vmem:[%s0 + $0x20] sm:$0xff]
  %v44 = vld [vmem:[%s0 + $0x28] sm:$0xff]
  %v45 = vld [vmem:[%s0 + $0x30] sm:$0xff]
  %v46 = vld [vmem:[%s0 + $0x38] sm:$0xff]
  %v47 = vld [vmem:[%s0 + $0x40] sm:$0xff]
  %v48 = vld [vmem:[%s0 + $0x48] sm:$0xff]
  %v49 = vld [vmem:[%s0 + $0x50] sm:$0xff]
  %v50 = vld [vmem:[%s0 + $0x58] sm:$0xff]
  %v51 = vld [vmem:[%s0 + $0x60] sm:$0xff]
  %v52 = vld [vmem:[%s0 + $0x68] sm:$0xff]
  %v53 = vld [vmem:[%s0 + $0x70] sm:$0xff]
  %v54 = vld [vmem:[%s0 + $0x78] sm:$0xff]
  %v55 = vpack.c.bf16 %v40, %v39
  %v56 = vpack.c.bf16 %v42, %v41
  %v57 = vpack.c.bf16 %v44, %v43
  %v58 = vpack.c.bf16 %v46, %v45
  %v59 = vpack.c.bf16 %v48, %v47
  %v60 = vpack.c.bf16 %v50, %v49
  %v61 = vpack.c.bf16 %v52, %v51
  %v62 = vpack.c.bf16 %v54, %v53
  %v63 = vld [vmem:[%s3] sm:$0xff]
  %v64 = vld [vmem:[%s3 + $0x8] sm:$0xff]
  %v65 = vld [vmem:[%s3 + $0x10] sm:$0xff]
  %v66 = vld [vmem:[%s3 + $0x18] sm:$0xff]
  %v67 = vld [vmem:[%s3 + $0x20] sm:$0xff]
  %v68 = vld [vmem:[%s3 + $0x28] sm:$0xff]
  %v69 = vld [vmem:[%s3 + $0x30] sm:$0x3]
  %v70 = vpack.c.bf16 %v64, %v63
  %v71 = vpack.c.bf16 %v66, %v65
  %v72 = vpack.c.bf16 %v68, %v67
  %v73 = vpack.c.bf16 %v69, %v69
  %v74 = vld [vmem:[%s1] sm:$0xff]
  %v75 = vld [vmem:[%s1 + $0x8] sm:$0xff]
  %v76 = vld [vmem:[%s1 + $0x10] sm:$0xff]
  %v77 = vld [vmem:[%s1 + $0x18] sm:$0xff]
  %v78 = vld [vmem:[%s1 + $0x20] sm:$0xff]
  %v79 = vld [vmem:[%s1 + $0x28] sm:$0xff]
  %v80 = vld [vmem:[%s1 + $0x30] sm:$0xff]
  %v81 = vld [vmem:[%s1 + $0x38] sm:$0xff]
  %v82 = vld [vmem:[%s1 + $0x40] sm:$0xff]
  %v83 = vld [vmem:[%s1 + $0x48] sm:$0xff]
  %v84 = vld [vmem:[%s1 + $0x50] sm:$0xff]
  %v85 = vld [vmem:[%s1 + $0x58] sm:$0xff]
  %v86 = vld [vmem:[%s1 + $0x60] sm:$0xff]
  %v87 = vld [vmem:[%s1 + $0x68] sm:$0xff]
  %v88 = vld [vmem:[%s1 + $0x70] sm:$0xff]
  %v89 = vld [vmem:[%s1 + $0x78] sm:$0xff]
  %v90 = vpack.c.bf16 %v75, %v74
  %v91 = vpack.c.bf16 %v77, %v76
  %v92 = vpack.c.bf16 %v79, %v78
  %v93 = vpack.c.bf16 %v81, %v80
  %v94 = vpack.c.bf16 %v83, %v82
  %v95 = vpack.c.bf16 %v85, %v84
  %v96 = vpack.c.bf16 %v87, %v86
  %v97 = vpack.c.bf16 %v89, %v88
  %vm98 = vcmask 31744
  %v100 = vsel %vm98, %v70, 0
  %v103 = vsel %vm98, %v71, 0
  %v106 = vsel %vm98, %v72, 0
  %v109 = vsel %vm98, %v73, 0
  %v112 = vsel %vm98, %v90, 0
  %v115 = vsel %vm98, %v91, 0
  %v118 = vsel %vm98, %v92, 0
  %v121 = vsel %vm98, %v93, 0
  %v124 = vsel %vm98, %v94, 0
  %v127 = vsel %vm98, %v95, 0
  %v130 = vsel %vm98, %v96, 0
  %v133 = vsel %vm98, %v97, 0
  %135 = vmatprep.subr.bf16.mxu0 0
  %136 = vmatpush1.bf16.xpose.msra.mxu0 %v112
  %137 = vmatprep.subr.bf16.mxu0 0
  %138 = vmatpush1.bf16.xpose.msra.mxu0 %v115
  %139 = vmatprep.subr.bf16.mxu0 0
  %140 = vmatpush1.bf16.xpose.msra.mxu0 %v118
  %141 = vmatprep.subr.bf16.mxu0 0
  %142 = vmatpush1.bf16.xpose.msra.mxu0 %v121
  %143 = vmatprep.subr.bf16.mxu0 0
  %144 = vmatpush1.bf16.xpose.msra.mxu0 %v124
  %145 = vmatprep.subr.bf16.mxu0 0
  %146 = vmatpush1.bf16.xpose.msra.mxu0 %v127
  %147 = vmatprep.subr.bf16.mxu0 0
  %148 = vmatpush1.bf16.xpose.msra.mxu0 %v130
  %149 = vmatprep.subr.bf16.mxu0 0
  %150 = vmatpush1.bf16.xpose.msra.mxu0 %v133
  %151 = vmatprep.subr.bf16.mxu0 0
  %152 = vmatpush1.bf16.xpose.msra.mxu0 0
  %153 = vmatprep.subr.bf16.mxu0 0
  %154 = vmatpush1.bf16.xpose.msra.mxu0 0
  %155 = vmatprep.subr.bf16.mxu0 0
  %156 = vmatpush1.bf16.xpose.msra.mxu0 0
  %157 = vmatprep.subr.bf16.mxu0 0
  %158 = vmatpush1.bf16.xpose.msra.mxu0 0
  %159 = vmatprep.subr.bf16.mxu0 0
  %160 = vmatpush1.bf16.xpose.msra.mxu0 0
  %161 = vmatprep.subr.bf16.mxu0 0
  %162 = vmatpush1.bf16.xpose.msra.mxu0 0
  %163 = vmatprep.subr.bf16.mxu0 0
  %164 = vmatpush1.bf16.xpose.msra.mxu0 0
  %165 = vmatprep.subr.bf16.mxu0 0
  %166 = vmatpush1.bf16.xpose.msra.mxu0 0
  %167 = vmatprep.mubr.bf16.mxu0 0
  %168 = vmatmul.mubr.bf16.gmra.mrb[0].mxu0 %v100
  %v169 = vpop.f32.mrb[0].mxu0
  %v170 = vadd.f32 0.0, %v169
  %v171 = vpop.f32.mrb[0].mxu0
  %v172 = vpop.f32.mrb[0].mxu0
  %v173 = vadd.f32 0.0, %v172
  %v174 = vpop.f32.mrb[0].mxu0
  %175 = vmatprep.mubr.bf16.mxu0 0
  %176 = vmatmul.mubr.bf16.gmra.mrb[0].mxu0 %v103
  %v177 = vpop.f32.mrb[0].mxu0
  %v178 = vadd.f32 0.0, %v177
  %v179 = vpop.f32.mrb[0].mxu0
  %v180 = vpop.f32.mrb[0].mxu0
  %v181 = vadd.f32 0.0, %v180
  %v182 = vpop.f32.mrb[0].mxu0
  %183 = vmatprep.mubr.bf16.mxu0 0
  %184 = vmatmul.mubr.bf16.gmra.mrb[0].mxu0 %v106
  %v185 = vpop.f32.mrb[0].mxu0
  %v186 = vadd.f32 0.0, %v185
  %v187 = vpop.f32.mrb[0].mxu0
  %v188 = vpop.f32.mrb[0].mxu0
  %v189 = vadd.f32 0.0, %v188
  %v190 = vpop.f32.mrb[0].mxu0
  %191 = vmatprep.mubr.bf16.mxu0 0
  %192 = vmatmul.mubr.bf16.gmra.mrb[0].mxu0 %v109
  %v193 = vpop.f32.mrb[0].mxu0
  %v194 = vadd.f32 0.0, %v193
  %v195 = vpop.f32.mrb[0].mxu0
  %v196 = vpop.f32.mrb[0].mxu0
  %v197 = vpop.f32.mrb[0].mxu0
  %198 = vdwg.mxu0
  %vm199 = vcmask 130048
  %v201 = vsel %vm199, %v35, 0
  %v204 = vsel %vm199, %v36, 0
  %v207 = vsel %vm199, %v37, 0
  %v210 = vsel %vm199, %v38, 0
  %v213 = vsel %vm199, %v55, 0
  %v216 = vsel %vm199, %v56, 0
  %v219 = vsel %vm199, %v57, 0
  %v222 = vsel %vm199, %v58, 0
  %v225 = vsel %vm199, %v59, 0
  %v228 = vsel %vm199, %v60, 0
  %v231 = vsel %vm199, %v61, 0
  %v234 = vsel %vm199, %v62, 0
  %236 = vmatprep.subr.bf16.mxu0 0
  %237 = vmatpush1.bf16.xpose.msra.mxu0 %v213
  %238 = vmatprep.subr.bf16.mxu0 0
  %239 = vmatpush1.bf16.xpose.msra.mxu0 %v216
  %240 = vmatprep.subr.bf16.mxu0 0
  %241 = vmatpush1.bf16.xpose.msra.mxu0 %v219
  %242 = vmatprep.subr.bf16.mxu0 0
  %243 = vmatpush1.bf16.xpose.msra.mxu0 %v222
  %244 = vmatprep.subr.bf16.mxu0 0
  %245 = vmatpush1.bf16.xpose.msra.mxu0 %v225
  %246 = vmatprep.subr.bf16.mxu0 0
  %247 = vmatpush1.bf16.xpose.msra.mxu0 %v228
  %248 = vmatprep.subr.bf16.mxu0 0
  %249 = vmatpush1.bf16.xpose.msra.mxu0 %v231
  %250 = vmatprep.subr.bf16.mxu0 0
  %251 = vmatpush1.bf16.xpose.msra.mxu0 %v234
  %252 = vmatprep.subr.bf16.mxu0 0
  %253 = vmatpush1.bf16.xpose.msra.mxu0 0
  %254 = vmatprep.subr.bf16.mxu0 0
  %255 = vmatpush1.bf16.xpose.msra.mxu0 0
  %256 = vmatprep.subr.bf16.mxu0 0
  %257 = vmatpush1.bf16.xpose.msra.mxu0 0
  %258 = vmatprep.subr.bf16.mxu0 0
  %259 = vmatpush1.bf16.xpose.msra.mxu0 0
  %260 = vmatprep.subr.bf16.mxu0 0
  %261 = vmatpush1.bf16.xpose.msra.mxu0 0
  %262 = vmatprep.subr.bf16.mxu0 0
  %263 = vmatpush1.bf16.xpose.msra.mxu0 0
  %264 = vmatprep.subr.bf16.mxu0 0
  %265 = vmatpush1.bf16.xpose.msra.mxu0 0
  %266 = vmatprep.subr.bf16.mxu0 0
  %267 = vmatpush1.bf16.xpose.msra.mxu0 0
  %268 = vmatprep.mubr.bf16.mxu0 0
  %269 = vmatmul.mubr.bf16.gmra.mrb[0].mxu0 %v201
  %v270 = vpop.f32.mrb[0].mxu0
  %v271 = vadd.f32 %v170, %v270
  %v272 = vpop.f32.mrb[0].mxu0
  %v273 = vpop.f32.mrb[0].mxu0
  %v274 = vadd.f32 %v173, %v273
  %v275 = vpop.f32.mrb[0].mxu0
  %276 = vmatprep.mubr.bf16.mxu0 0
  %277 = vmatmul.mubr.bf16.gmra.mrb[0].mxu0 %v204
  %v278 = vpop.f32.mrb[0].mxu0
  %v279 = vadd.f32 %v178, %v278
  %v280 = vpop.f32.mrb[0].mxu0
  %v281 = vpop.f32.mrb[0].mxu0
  %v282 = vadd.f32 %v181, %v281
  %v283 = vpop.f32.mrb[0].mxu0
  %284 = vmatprep.mubr.bf16.mxu0 0
  %285 = vmatmul.mubr.bf16.gmra.mrb[0].mxu0 %v207
  %v286 = vpop.f32.mrb[0].mxu0
  %v287 = vadd.f32 %v186, %v286
  %v288 = vpop.f32.mrb[0].mxu0
  %v289 = vpop.f32.mrb[0].mxu0
  %v290 = vadd.f32 %v189, %v289
  %v291 = vpop.f32.mrb[0].mxu0
  %292 = vmatprep.mubr.bf16.mxu0 0
  %293 = vmatmul.mubr.bf16.gmra.mrb[0].mxu0 %v210
  %v294 = vpop.f32.mrb[0].mxu0
  %v295 = vadd.f32 %v194, %v294
  %v296 = vpop.f32.mrb[0].mxu0
  %v297 = vpop.f32.mrb[0].mxu0
  %v298 = vpop.f32.mrb[0].mxu0
  %299 = vdwg.mxu0
  %v300 = vld [vmem:[%s4] sm:$0xff]
  %v301 = vld [vmem:[%s4 + $0x8] sm:$0xff]
  %v302 = vld [vmem:[%s4 + $0x10] sm:$0xff]
  %v303 = vld [vmem:[%s4 + $0x18] sm:$0xff]
  %v304 = vld [vmem:[%s4 + $0x20] sm:$0xff]
  %v305 = vld [vmem:[%s4 + $0x28] sm:$0xff]
  %v306 = vld [vmem:[%s4 + $0x30] sm:$0x3]
  %308 = vset.pattern.permute.xlu0 0
  %309 = vperm.xlu0 %308, %v300
  %v310 = vpop.permute.xlu0 %309
  %313 = vset.pattern.permute.xlu0 0
  %314 = vperm.xlu0 %313, %v301
  %v315 = vpop.permute.xlu0 %314
  %318 = vset.pattern.permute.xlu0 0
  %319 = vperm.xlu0 %318, %v302
  %v320 = vpop.permute.xlu0 %319
  %323 = vset.pattern.permute.xlu0 0
  %324 = vperm.xlu0 %323, %v303
  %v325 = vpop.permute.xlu0 %324
  %328 = vset.pattern.permute.xlu0 0
  %329 = vperm.xlu0 %328, %v304
  %v330 = vpop.permute.xlu0 %329
  %333 = vset.pattern.permute.xlu0 0
  %334 = vperm.xlu0 %333, %v305
  %v335 = vpop.permute.xlu0 %334
  %338 = vset.pattern.permute.xlu0 0
  %339 = vperm.xlu0 %338, %v306
  %v340 = vpop.permute.xlu0 %339
  %v342 = vadd.f32 %v271, %v310
  %v343 = vadd.f32 %v274, %v315
  %v344 = vadd.f32 %v279, %v320
  %v345 = vadd.f32 %v282, %v325
  %v346 = vadd.f32 %v287, %v330
  %v347 = vadd.f32 %v290, %v335
  %v348 = vadd.f32 %v295, %v340
  %v349 = vmax.f32 %v342, 0.0
  %v350 = vmax.f32 %v343, 0.0
  %v351 = vmax.f32 %v344, 0.0
  %v352 = vmax.f32 %v345, 0.0
  %v353 = vmax.f32 %v346, 0.0
  %v354 = vmax.f32 %v347, 0.0
  %v355 = vmax.f32 %v348, 0.0
  %v356 = vld [vmem:[%s5] sm:$0xff]
  %v357 = vld [vmem:[%s5 + $0x8] sm:$0xff]
  %v358 = vld [vmem:[%s5 + $0x10] sm:$0xff]
  %v359 = vld [vmem:[%s5 + $0x18] sm:$0xff]
  %v360 = vld [vmem:[%s5 + $0x20] sm:$0xff]
  %v361 = vld [vmem:[%s5 + $0x28] sm:$0xff]
  %v362 = vld [vmem:[%s5 + $0x30] sm:$0x3]
  %364 = vset.pattern.permute.xlu0 0
  %365 = vperm.xlu0 %364, %v356
  %v366 = vpop.permute.xlu0 %365
  %369 = vset.pattern.permute.xlu0 0
  %370 = vperm.xlu0 %369, %v357
  %v371 = vpop.permute.xlu0 %370
  %374 = vset.pattern.permute.xlu0 0
  %375 = vperm.xlu0 %374, %v358
  %v376 = vpop.permute.xlu0 %375
  %379 = vset.pattern.permute.xlu0 0
  %380 = vperm.xlu0 %379, %v359
  %v381 = vpop.permute.xlu0 %380
  %384 = vset.pattern.permute.xlu0 0
  %385 = vperm.xlu0 %384, %v360
  %v386 = vpop.permute.xlu0 %385
  %389 = vset.pattern.permute.xlu0 0
  %390 = vperm.xlu0 %389, %v361
  %v391 = vpop.permute.xlu0 %390
  %394 = vset.pattern.permute.xlu0 0
  %395 = vperm.xlu0 %394, %v362
  %v396 = vpop.permute.xlu0 %395
  %v398 = vmul.f32 %v349, %v366
  %v399 = vmul.f32 %v350, %v371
  %v400 = vmul.f32 %v351, %v376
  %v401 = vmul.f32 %v352, %v381
  %v402 = vmul.f32 %v353, %v386
  %v403 = vmul.f32 %v354, %v391
  %v404 = vmul.f32 %v355, %v396
  %v405 = vadd.f32 %v398, %v399
  %v406 = vadd.f32 %v405, %v400
  %v407 = vadd.f32 %v406, %v401
  %v408 = vadd.f32 %v407, %v402
  %v409 = vadd.f32 %v408, %v403
  %vm410 = vcmask 1041408
  %v411 = vsel %vm410, %v404, 0.0
  %v412 = vadd.f32 %v409, %v411
  %v413 = vrot.slane %v412, 4
  %v414 = vadd.f32 %v412, %v413
  %v415 = vrot.slane %v414, 2
  %v416 = vadd.f32 %v414, %v415
  %v417 = vrot.slane %v416, 1
  %v418 = vadd.f32 %v416, %v417
  %s419 = sld [smem:[#allocation2]]
  %v420 = vstv %s419
  %v421 = vadd.f32 %v418, %v420
  %422 = vst [vmem:[%s7] sm:$0x1] %v421
  // Predicated region
  $region30: #{cnet_forward.1} parent=0 // pred_check
    _
  $region31: #{cnet_forward.1} parent=0 // pred_check_branch
    %424 = sbr.rel (0) target = $region33
  $region32: #{cnet_forward.1} parent=0 // pred_region
    _
  $region33: #{cnet_forward.1} parent=0 // pred_fallthru
    _
  // Predicated region
  $region34: #{cnet_forward.1} parent=0 // pred_check
    _
  $region35: #{cnet_forward.1} parent=0 // pred_check_branch
    %426 = sbr.rel (0) target = $region37
  $region36: #{cnet_forward.1} parent=0 // pred_region
    _
  $region37: #{cnet_forward.1} parent=0 // pred_fallthru
    _

</llo_original>
